<compile_context>
chip_gen: v7x
topology: tpu7x:2x2x1
jax: 0.10.0
libtpu: 0.0.40
codegen_flags: <defaults>
</compile_context>

<pallas_src>
import functools

import jax
import jax.numpy as jnp
from jax import lax
from jax.experimental import pallas as pl
from jax.experimental.pallas import tpu as pltpu

EPS = 1e-5  # GroupNorm default eps
SQRT_HALF = 0.7071067811865476


def _poolformer_kernel(x_ref, masks_ref, s1_ref, g2_ref, b2_ref,
                       w1_ref, bb1_ref, w2_ref, bb2_ref, o_ref,
                       *scratch, H, W, chunk):
    HW = H * W
    n_chunks = HW // chunk
    inv_n = 1.0 / (x_ref.shape[0] * HW)

    x = x_ref[...].astype(jnp.float32)                    # [C, HW]

    masks = masks_ref[...]                                 # [8, HW] f32 (host precomputed)
    m_left, m_right = masks[0:1, :], masks[1:2, :]         # neighbor-valid masks
    m_up, m_down = masks[2:3, :], masks[3:4, :]
    inv_cnt = masks[4:5, :]                                # 1 / (valid 3x3 count)

    # ---- branch 1: token mixer (3x3 avg-pool - identity), layer-scaled -------
    # GroupNorm bias cancels in (pool - id); only the scale survives.
    mu1 = jnp.sum(x) * inv_n
    var1 = jnp.sum(x * x) * inv_n - mu1 * mu1
    scale1 = s1_ref[...] * lax.rsqrt(var1 + EPS)           # [C,1] = ls1*g1*rsqrt

    # Separable masked pool on the raw input.  pltpu.roll(v, s, 1)[:, j] ==
    # v[:, j - s]; wrap-around contributions are zeroed by the validity masks.
    h_sum = (x
             + m_left * pltpu.roll(x, shift=1, axis=1)            # x[:, j-1]
             + m_right * pltpu.roll(x, shift=HW - 1, axis=1))     # x[:, j+1]
    v_sum = (h_sum
             + m_up * pltpu.roll(h_sum, shift=W, axis=1)          # row above
             + m_down * pltpu.roll(h_sum, shift=HW - W, axis=1))  # row below
    pooled = v_sum * inv_cnt                                      # count_include_pad=False
    x1 = x + scale1 * (pooled - x)

    # ---- branch 2: ConvMlp (1x1 -> GELU -> 1x1), ls2 pre-folded into fc2 -----
    mu2 = jnp.sum(x1) * inv_n
    var2 = jnp.sum(x1 * x1) * inv_n - mu2 * mu2
    a2 = g2_ref[...] * lax.rsqrt(var2 + EPS)               # [C,1]
    c2 = b2_ref[...] - mu2 * a2                            # [C,1]
    y2 = (x1 * a2 + c2).astype(jnp.bfloat16)               # norm2(x1), cast once

    w1 = w1_ref[...]                                       # [hidden, C] bf16
    w2 = w2_ref[...]                                       # [C, hidden] bf16 (ls2 folded)
    bb1 = bb1_ref[...]                                     # [hidden, 1] f32
    bb2 = bb2_ref[...]                                     # [C, 1] f32 (ls2 folded)

    def mlp(y2c):
        h = jnp.dot(w1, y2c, preferred_element_type=jnp.float32) + bb1
        h = 0.5 * h * (1.0 + lax.erf(h * SQRT_HALF))       # exact (erf) GELU
        return jnp.dot(w2, h.astype(jnp.bfloat16),
                       preferred_element_type=jnp.float32) + bb2

    if n_chunks == 1:
        o_ref[...] = (x1 + mlp(y2)).astype(o_ref.dtype)
    else:
        # Stash x1 in the output block and norm2(x1) (bf16) in scratch, then
        # walk the lane axis in chunks so the [hidden, chunk] intermediate
        # stays bounded in VMEM.
        y2_scr = scratch[0]
        o_ref[...] = x1.astype(o_ref.dtype)
        y2_scr[...] = y2

        def body(ci, carry):
            c0 = ci * chunk
            if chunk % 128 == 0:
                c0 = pl.multiple_of(c0, 128)
            xc = o_ref[:, pl.ds(c0, chunk)].astype(jnp.float32)
            m = mlp(y2_scr[:, pl.ds(c0, chunk)])
            o_ref[:, pl.ds(c0, chunk)] = (xc + m).astype(o_ref.dtype)
            return carry

        lax.fori_loop(0, n_chunks, body, 0, unroll=(n_chunks <= 4))


def _pick_chunk(HW, max_chunk=2048):
    """Largest divisor of HW that is <= max_chunk (prefer multiples of 128)."""
    if HW <= max_chunk:
        return HW
    for c in range(max_chunk - max_chunk % 128, 127, -128):
        if HW % c == 0:
            return c
    for c in range(max_chunk, 0, -1):
        if HW % c == 0:
            return c
    return HW


def poolformer_block(x, params, *, max_chunk=2048):
    """x: [B, C, H, W] float32 (NCHW).  Returns same shape."""
    B, C, H, W = x.shape
    HW = H * W
    hidden = params["w1"].shape[0]
    chunk = _pick_chunk(HW, max_chunk)
    n_chunks = HW // chunk

    x_flat = x.reshape(B, C, HW)

    # Host-precomputed pooling validity masks + reciprocal valid-counts.
    pos = jnp.arange(HW, dtype=jnp.int32)
    ww = pos % W
    hh = pos // W
    m_left = (ww >= 1).astype(jnp.float32)
    m_right = (ww <= W - 2).astype(jnp.float32)
    m_up = (hh >= 1).astype(jnp.float32)
    m_down = (hh <= H - 2).astype(jnp.float32)
    inv_cnt = 1.0 / ((1.0 + m_left + m_right) * (1.0 + m_up + m_down))
    masks = jnp.zeros((8, HW), jnp.float32)
    masks = masks.at[0].set(m_left).at[1].set(m_right)
    masks = masks.at[2].set(m_up).at[3].set(m_down).at[4].set(inv_cnt)

    # Host-side parameter folding (see module header).
    s1 = (params["ls1"] * params["g1"]).astype(jnp.float32)        # [C,1]
    w1 = params["w1"].astype(jnp.bfloat16)                         # [hidden,C]
    w2 = (params["ls2"] * params["w2"]).astype(jnp.bfloat16)       # [C,hidden]
    bb2 = (params["ls2"] * params["bb2"]).astype(jnp.float32)      # [C,1]

    param_list = [masks, s1, params["g2"], params["b2"],
                  w1, params["bb1"], w2, bb2]

    scratch_shapes = []
    if n_chunks > 1:
        scratch_shapes.append(pltpu.VMEM((C, HW), jnp.bfloat16))

    # VMEM budget: double-buffered in/out blocks + params + live temporaries.
    block_bytes = C * HW * 4
    vmem_est = (4 * block_bytes                       # in + out, double-buffered
                + 8 * HW * 4                          # masks
                + 4 * hidden * C * 2                  # bf16 weights (x2 buffers)
                + 4 * (hidden + 4 * C) * 4            # small per-channel vectors
                + 6 * block_bytes                     # f32 temporaries (pool/x1/y2)
                + (2 * hidden + 2 * C) * chunk * 4    # MLP chunk intermediates
                + (C * HW * 2 if n_chunks > 1 else 0))
    vmem_limit = int(min(max(2 * vmem_est, 16 * 1024 * 1024), 48 * 1024 * 1024))

    cost = pl.CostEstimate(
        flops=4 * B * C * hidden * HW + 40 * B * C * HW,
        transcendentals=B * hidden * HW,
        bytes_accessed=2 * B * C * HW * 4 + 4 * hidden * C + 8 * HW * 4,
    )

    kernel = functools.partial(_poolformer_kernel, H=H, W=W, chunk=chunk)
    out = pl.pallas_call(
        kernel,
        out_shape=jax.ShapeDtypeStruct((B, C, HW), x.dtype),
        grid_spec=pltpu.PrefetchScalarGridSpec(
            num_scalar_prefetch=0,
            grid=(B,),
            in_specs=[pl.BlockSpec((None, C, HW), lambda b: (b, 0, 0))]
                     + [pl.BlockSpec(p.shape, lambda b: (0, 0)) for p in param_list],
            out_specs=pl.BlockSpec((None, C, HW), lambda b: (b, 0, 0)),
            scratch_shapes=scratch_shapes,
        ),
        compiler_params=pltpu.CompilerParams(
            dimension_semantics=("parallel",),
            vmem_limit_bytes=vmem_limit,
        ),
        cost_estimate=cost,
    )(x_flat, *param_list)
    return out.reshape(B, C, H, W)


def make_params(dim, mlp_ratio, layer_scale_init_value, key):
    hidden = int(dim * mlp_ratio)
    k1, k2, k3, k4 = jax.random.split(key, 4)
    f = jnp.float32
    return {
        # GroupNorm(1, dim) affine params (randomized to exercise the math).
        "g1": (1.0 + 0.1 * jax.random.normal(k1, (dim, 1))).astype(f),
        "b1": (0.1 * jax.random.normal(k2, (dim, 1))).astype(f),
        "g2": (1.0 + 0.1 * jax.random.normal(k3, (dim, 1))).astype(f),
        "b2": (0.1 * jax.random.normal(k4, (dim, 1))).astype(f),
        # LayerScale params: init_value * ones(dim)
        "ls1": (layer_scale_init_value * jnp.ones((dim, 1))).astype(f),
        "ls2": (layer_scale_init_value * jnp.ones((dim, 1))).astype(f),
        # ConvMlp 1x1 convs (fc1: dim->hidden, fc2: hidden->dim), with bias.
        "w1": (0.1 * jax.random.normal(jax.random.fold_in(key, 10), (hidden, dim))).astype(f),
        "bb1": (0.05 * jax.random.normal(jax.random.fold_in(key, 11), (hidden, 1))).astype(f),
        "w2": (0.1 * jax.random.normal(jax.random.fold_in(key, 12), (dim, hidden))).astype(f),
        "bb2": (0.05 * jax.random.normal(jax.random.fold_in(key, 13), (dim, 1))).astype(f),
    }


def reference_forward(x, params):
    """Pure-JAX reference matching the PyTorch module semantics (NCHW, f32)."""
    g1, b1 = params["g1"][:, 0], params["b1"][:, 0]
    g2, b2 = params["g2"][:, 0], params["b2"][:, 0]
    ls1, ls2 = params["ls1"][:, 0], params["ls2"][:, 0]
    w1, bb1 = params["w1"], params["bb1"][:, 0]
    w2, bb2 = params["w2"], params["bb2"][:, 0]

    def gn(v, g, b):
        mu = v.mean(axis=(1, 2, 3), keepdims=True)
        var = ((v - mu) ** 2).mean(axis=(1, 2, 3), keepdims=True)
        return (v - mu) / jnp.sqrt(var + EPS) * g[None, :, None, None] + b[None, :, None, None]

    pad = [(0, 0), (0, 0), (1, 1), (1, 1)]
    y1 = gn(x, g1, b1)
    sums = lax.reduce_window(y1, 0.0, lax.add, (1, 1, 3, 3), (1, 1, 1, 1), pad)
    cnts = lax.reduce_window(jnp.ones_like(y1), 0.0, lax.add, (1, 1, 3, 3), (1, 1, 1, 1), pad)
    x = x + ls1[None, :, None, None] * (sums / cnts - y1)

    y2 = gn(x, g2, b2)
    h = jnp.einsum("oc,bchw->bohw", w1, y2) + bb1[None, :, None, None]
    h = jax.nn.gelu(h, approximate=False)
    m = jnp.einsum("co,bohw->bchw", w2, h) + bb2[None, :, None, None]
    x = x + ls2[None, :, None, None] * m
    return x


if __name__ == "__main__":
    B, C, H, W = 2, 4, 16, 16
    mlp_ratio = 4.0
    layer_scale_init_value = 1e-5

    key = jax.random.PRNGKey(0)
    kx, kp = jax.random.split(key)
    x = jax.random.normal(kx, (B, C, H, W), dtype=jnp.float32)
    params = make_params(C, mlp_ratio, layer_scale_init_value, kp)

    ref = reference_forward(x, params)

    # Default path (no HW chunking at this small spatial size).
    out = jax.block_until_ready(poolformer_block(x, params))
    assert out.shape == ref.shape
    max_err = float(jnp.max(jnp.abs(out - ref)))
    assert jnp.allclose(out, ref, atol=1e-4, rtol=1e-4), max_err

    # Also exercise the HW-chunked MLP path (fori_loop + bf16 scratch).
    out_chunked = jax.block_until_ready(poolformer_block(x, params, max_chunk=128))
    max_err_c = float(jnp.max(jnp.abs(out_chunked - ref)))
    assert jnp.allclose(out_chunked, ref, atol=1e-4, rtol=1e-4), max_err_c

    print("KERNEL_OK")
</pallas_src>

<mosaic_0001>
module attributes {stable_mosaic.version = 11 : i64} {
  func.func @_poolformer_kernel(%arg0: i32, %arg1: memref<1x4x256xf32, #tpu.memory_space<vmem>>, %arg2: memref<8x256xf32, #tpu.memory_space<vmem>>, %arg3: memref<4x1xf32, #tpu.memory_space<vmem>>, %arg4: memref<4x1xf32, #tpu.memory_space<vmem>>, %arg5: memref<4x1xf32, #tpu.memory_space<vmem>>, %arg6: memref<16x4xbf16, #tpu.memory_space<vmem>>, %arg7: memref<16x1xf32, #tpu.memory_space<vmem>>, %arg8: memref<4x16xbf16, #tpu.memory_space<vmem>>, %arg9: memref<4x1xf32, #tpu.memory_space<vmem>>, %arg10: memref<1x4x256xf32, #tpu.memory_space<vmem>>) attributes {dimension_semantics = [#tpu.dimension_semantics<parallel>], iteration_bounds = array<i64: 2>, scalar_prefetch = 0 : i64, scratch_operands = 0 : i64, tpu.core_type = #tpu.core_type<tc>, window_params = [{transform_indices = @transform_0, window_bounds = array<i64: 1, 4, 256>}, {pipeline_mode = #tpu.pipeline_mode<synchronous>, transform_indices = @transform_1, window_bounds = array<i64: 8, 256>}, {pipeline_mode = #tpu.pipeline_mode<synchronous>, transform_indices = @transform_2, window_bounds = array<i64: 4, 1>}, {pipeline_mode = #tpu.pipeline_mode<synchronous>, transform_indices = @transform_3, window_bounds = array<i64: 4, 1>}, {pipeline_mode = #tpu.pipeline_mode<synchronous>, transform_indices = @transform_4, window_bounds = array<i64: 4, 1>}, {pipeline_mode = #tpu.pipeline_mode<synchronous>, transform_indices = @transform_5, window_bounds = array<i64: 16, 4>}, {pipeline_mode = #tpu.pipeline_mode<synchronous>, transform_indices = @transform_6, window_bounds = array<i64: 16, 1>}, {pipeline_mode = #tpu.pipeline_mode<synchronous>, transform_indices = @transform_7, window_bounds = array<i64: 4, 16>}, {pipeline_mode = #tpu.pipeline_mode<synchronous>, transform_indices = @transform_8, window_bounds = array<i64: 4, 1>}, {transform_indices = @transform_9, window_bounds = array<i64: 1, 4, 256>}]} {
    %c0 = arith.constant 0 : index
    %c0_0 = arith.constant 0 : index
    %c0_1 = arith.constant 0 : index
    %0 = vector.load %arg1[%c0, %c0_0, %c0_1] : memref<1x4x256xf32, #tpu.memory_space<vmem>>, vector<1x4x256xf32>
    %1 = vector.shape_cast %0 : vector<1x4x256xf32> to vector<4x256xf32>
    %c0_2 = arith.constant 0 : index
    %c0_3 = arith.constant 0 : index
    %2 = vector.load %arg2[%c0_2, %c0_3] : memref<8x256xf32, #tpu.memory_space<vmem>>, vector<8x256xf32>
    %3 = vector.extract_strided_slice %2 {offsets = [0, 0], sizes = [1, 256], strides = [1, 1]} : vector<8x256xf32> to vector<1x256xf32>
    %4 = vector.extract_strided_slice %2 {offsets = [1, 0], sizes = [1, 256], strides = [1, 1]} : vector<8x256xf32> to vector<1x256xf32>
    %5 = vector.extract_strided_slice %2 {offsets = [2, 0], sizes = [1, 256], strides = [1, 1]} : vector<8x256xf32> to vector<1x256xf32>
    %6 = vector.extract_strided_slice %2 {offsets = [3, 0], sizes = [1, 256], strides = [1, 1]} : vector<8x256xf32> to vector<1x256xf32>
    %7 = vector.extract_strided_slice %2 {offsets = [4, 0], sizes = [1, 256], strides = [1, 1]} : vector<8x256xf32> to vector<1x256xf32>
    %8 = vector.shape_cast %1 : vector<4x256xf32> to vector<1x4x256xf32>
    %cst = arith.constant dense<0.000000e+00> : vector<1xf32>
    %9 = vector.multi_reduction <add>, %8, %cst [1, 2] : vector<1x4x256xf32> to vector<1xf32>
    %10 = vector.shape_cast %9 : vector<1xf32> to vector<1x1x1xf32>
    %11 = vector.extract %10[0, 0, 0] : f32 from vector<1x1x1xf32>
    %cst_4 = arith.constant 9.765625E-4 : f32
    %12 = arith.mulf %11, %cst_4 : f32
    %13 = arith.mulf %1, %1 : vector<4x256xf32>
    %14 = vector.shape_cast %13 : vector<4x256xf32> to vector<1x4x256xf32>
    %cst_5 = arith.constant dense<0.000000e+00> : vector<1xf32>
    %15 = vector.multi_reduction <add>, %14, %cst_5 [1, 2] : vector<1x4x256xf32> to vector<1xf32>
    %16 = vector.shape_cast %15 : vector<1xf32> to vector<1x1x1xf32>
    %17 = vector.extract %16[0, 0, 0] : f32 from vector<1x1x1xf32>
    %cst_6 = arith.constant 9.765625E-4 : f32
    %18 = arith.mulf %17, %cst_6 : f32
    %19 = arith.mulf %12, %12 : f32
    %20 = arith.subf %18, %19 : f32
    %c0_7 = arith.constant 0 : index
    %c0_8 = arith.constant 0 : index
    %21 = vector.load %arg3[%c0_7, %c0_8] : memref<4x1xf32, #tpu.memory_space<vmem>>, vector<4x1xf32>
    %cst_9 = arith.constant 9.99999974E-6 : f32
    %22 = arith.addf %20, %cst_9 : f32
    %23 = math.rsqrt %22 : f32
    %24 = vector.broadcast %23 : f32 to vector<4x1xf32>
    %25 = arith.mulf %21, %24 : vector<4x1xf32>
    %c1_i32 = arith.constant 1 : i32
    %26 = tpu.dynamic_rotate %1 by %c1_i32 dim 1 : vector<4x256xf32>, i32 -> vector<4x256xf32>
    %27 = vector.broadcast %3 : vector<1x256xf32> to vector<4x256xf32>
    %28 = arith.mulf %27, %26 : vector<4x256xf32>
    %29 = arith.addf %1, %28 : vector<4x256xf32>
    %c255_i32 = arith.constant 255 : i32
    %30 = tpu.dynamic_rotate %1 by %c255_i32 dim 1 : vector<4x256xf32>, i32 -> vector<4x256xf32>
    %31 = vector.broadcast %4 : vector<1x256xf32> to vector<4x256xf32>
    %32 = arith.mulf %31, %30 : vector<4x256xf32>
    %33 = arith.addf %29, %32 : vector<4x256xf32>
    %c16_i32 = arith.constant 16 : i32
    %34 = tpu.dynamic_rotate %33 by %c16_i32 dim 1 : vector<4x256xf32>, i32 -> vector<4x256xf32>
    %35 = vector.broadcast %5 : vector<1x256xf32> to vector<4x256xf32>
    %36 = arith.mulf %35, %34 : vector<4x256xf32>
    %37 = arith.addf %33, %36 : vector<4x256xf32>
    %c240_i32 = arith.constant 240 : i32
    %38 = tpu.dynamic_rotate %33 by %c240_i32 dim 1 : vector<4x256xf32>, i32 -> vector<4x256xf32>
    %39 = vector.broadcast %6 : vector<1x256xf32> to vector<4x256xf32>
    %40 = arith.mulf %39, %38 : vector<4x256xf32>
    %41 = arith.addf %37, %40 : vector<4x256xf32>
    %42 = vector.broadcast %7 : vector<1x256xf32> to vector<4x256xf32>
    %43 = arith.mulf %41, %42 : vector<4x256xf32>
    %44 = arith.subf %43, %1 : vector<4x256xf32>
    %45 = vector.broadcast %25 : vector<4x1xf32> to vector<4x256xf32>
    %46 = arith.mulf %45, %44 : vector<4x256xf32>
    %47 = arith.addf %1, %46 : vector<4x256xf32>
    %48 = vector.shape_cast %47 : vector<4x256xf32> to vector<1x4x256xf32>
    %cst_10 = arith.constant dense<0.000000e+00> : vector<1xf32>
    %49 = vector.multi_reduction <add>, %48, %cst_10 [1, 2] : vector<1x4x256xf32> to vector<1xf32>
    %50 = vector.shape_cast %49 : vector<1xf32> to vector<1x1x1xf32>
    %51 = vector.extract %50[0, 0, 0] : f32 from vector<1x1x1xf32>
    %cst_11 = arith.constant 9.765625E-4 : f32
    %52 = arith.mulf %51, %cst_11 : f32
    %53 = arith.mulf %47, %47 : vector<4x256xf32>
    %54 = vector.shape_cast %53 : vector<4x256xf32> to vector<1x4x256xf32>
    %cst_12 = arith.constant dense<0.000000e+00> : vector<1xf32>
    %55 = vector.multi_reduction <add>, %54, %cst_12 [1, 2] : vector<1x4x256xf32> to vector<1xf32>
    %56 = vector.shape_cast %55 : vector<1xf32> to vector<1x1x1xf32>
    %57 = vector.extract %56[0, 0, 0] : f32 from vector<1x1x1xf32>
    %cst_13 = arith.constant 9.765625E-4 : f32
    %58 = arith.mulf %57, %cst_13 : f32
    %59 = arith.mulf %52, %52 : f32
    %60 = arith.subf %58, %59 : f32
    %c0_14 = arith.constant 0 : index
    %c0_15 = arith.constant 0 : index
    %61 = vector.load %arg4[%c0_14, %c0_15] : memref<4x1xf32, #tpu.memory_space<vmem>>, vector<4x1xf32>
    %cst_16 = arith.constant 9.99999974E-6 : f32
    %62 = arith.addf %60, %cst_16 : f32
    %63 = math.rsqrt %62 : f32
    %64 = vector.broadcast %63 : f32 to vector<4x1xf32>
    %65 = arith.mulf %61, %64 : vector<4x1xf32>
    %c0_17 = arith.constant 0 : index
    %c0_18 = arith.constant 0 : index
    %66 = vector.load %arg5[%c0_17, %c0_18] : memref<4x1xf32, #tpu.memory_space<vmem>>, vector<4x1xf32>
    %67 = vector.broadcast %52 : f32 to vector<4x1xf32>
    %68 = arith.mulf %67, %65 : vector<4x1xf32>
    %69 = arith.subf %66, %68 : vector<4x1xf32>
    %70 = vector.broadcast %65 : vector<4x1xf32> to vector<4x256xf32>
    %71 = arith.mulf %47, %70 : vector<4x256xf32>
    %72 = vector.broadcast %69 : vector<4x1xf32> to vector<4x256xf32>
    %73 = arith.addf %71, %72 : vector<4x256xf32>
    %74 = arith.truncf %73 : vector<4x256xf32> to vector<4x256xbf16>
    %c0_19 = arith.constant 0 : index
    %c0_20 = arith.constant 0 : index
    %75 = vector.load %arg6[%c0_19, %c0_20] : memref<16x4xbf16, #tpu.memory_space<vmem>>, vector<16x4xbf16>
    %c0_21 = arith.constant 0 : index
    %c0_22 = arith.constant 0 : index
    %76 = vector.load %arg8[%c0_21, %c0_22] : memref<4x16xbf16, #tpu.memory_space<vmem>>, vector<4x16xbf16>
    %c0_23 = arith.constant 0 : index
    %c0_24 = arith.constant 0 : index
    %77 = vector.load %arg7[%c0_23, %c0_24] : memref<16x1xf32, #tpu.memory_space<vmem>>, vector<16x1xf32>
    %c0_25 = arith.constant 0 : index
    %c0_26 = arith.constant 0 : index
    %78 = vector.load %arg9[%c0_25, %c0_26] : memref<4x1xf32, #tpu.memory_space<vmem>>, vector<4x1xf32>
    %cst_27 = arith.constant dense<0.000000e+00> : vector<16x256xf32>
    %79 = tpu.matmul %75, %74, %cst_27 {dimension_numbers = #tpu.dot_dimension_numbers<[1], [0], [0], [1], [0, 0, 1, 1], [], []>} : vector<16x4xbf16>, vector<4x256xbf16>, vector<16x256xf32> -> vector<16x256xf32>
    %80 = vector.broadcast %77 : vector<16x1xf32> to vector<16x256xf32>
    %81 = arith.addf %79, %80 : vector<16x256xf32>
    %cst_28 = arith.constant 5.000000e-01 : f32
    %82 = vector.broadcast %cst_28 : f32 to vector<16x256xf32>
    %83 = arith.mulf %82, %81 : vector<16x256xf32>
    %cst_29 = arith.constant 0.707106769 : f32
    %84 = vector.broadcast %cst_29 : f32 to vector<16x256xf32>
    %85 = arith.mulf %81, %84 : vector<16x256xf32>
    %86 = math.erf %85 : vector<16x256xf32>
    %cst_30 = arith.constant 1.000000e+00 : f32
    %87 = vector.broadcast %cst_30 : f32 to vector<16x256xf32>
    %88 = arith.addf %87, %86 : vector<16x256xf32>
    %89 = arith.mulf %83, %88 : vector<16x256xf32>
    %90 = arith.truncf %89 : vector<16x256xf32> to vector<16x256xbf16>
    %cst_31 = arith.constant dense<0.000000e+00> : vector<4x256xf32>
    %91 = tpu.matmul %76, %90, %cst_31 {dimension_numbers = #tpu.dot_dimension_numbers<[1], [0], [0], [1], [0, 0, 1, 1], [], []>} : vector<4x16xbf16>, vector<16x256xbf16>, vector<4x256xf32> -> vector<4x256xf32>
    %92 = vector.broadcast %78 : vector<4x1xf32> to vector<4x256xf32>
    %93 = arith.addf %91, %92 : vector<4x256xf32>
    %94 = arith.addf %47, %93 : vector<4x256xf32>
    %c0_32 = arith.constant 0 : index
    %c0_33 = arith.constant 0 : index
    %c0_34 = arith.constant 0 : index
    %95 = vector.load %arg10[%c0_32, %c0_33, %c0_34] : memref<1x4x256xf32, #tpu.memory_space<vmem>>, vector<1x4x256xf32>
    %96 = vector.shape_cast %95 : vector<1x4x256xf32> to vector<4x256xf32>
    %97 = vector.shape_cast %94 : vector<4x256xf32> to vector<1x4x256xf32>
    tpu.vector_store %arg10[%c0_32, %c0_33, %c0_34], %97 {strides = array<i32>} : memref<1x4x256xf32, #tpu.memory_space<vmem>>, vector<1x4x256xf32>,
    return
  }
  func.func @transform_0(%arg0: i32) -> (i32, i32, i32) {
    %c0_i32 = arith.constant 0 : i32
    %c0_i32_0 = arith.constant 0 : i32
    %c0_i32_1 = arith.constant 0 : i32
    return %arg0, %c0_i32, %c0_i32_0 : i32, i32, i32
  }
  func.func @transform_1(%arg0: i32) -> (i32, i32) {
    %c0_i32 = arith.constant 0 : i32
    %c0_i32_0 = arith.constant 0 : i32
    %c0_i32_1 = arith.constant 0 : i32
    return %c0_i32, %c0_i32_0 : i32, i32
  }
  func.func @transform_2(%arg0: i32) -> (i32, i32) {
    %c0_i32 = arith.constant 0 : i32
    %c0_i32_0 = arith.constant 0 : i32
    %c0_i32_1 = arith.constant 0 : i32
    return %c0_i32, %c0_i32_0 : i32, i32
  }
  func.func @transform_3(%arg0: i32) -> (i32, i32) {
    %c0_i32 = arith.constant 0 : i32
    %c0_i32_0 = arith.constant 0 : i32
    %c0_i32_1 = arith.constant 0 : i32
    return %c0_i32, %c0_i32_0 : i32, i32
  }
  func.func @transform_4(%arg0: i32) -> (i32, i32) {
    %c0_i32 = arith.constant 0 : i32
    %c0_i32_0 = arith.constant 0 : i32
    %c0_i32_1 = arith.constant 0 : i32
    return %c0_i32, %c0_i32_0 : i32, i32
  }
  func.func @transform_5(%arg0: i32) -> (i32, i32) {
    %c0_i32 = arith.constant 0 : i32
    %c0_i32_0 = arith.constant 0 : i32
    %c0_i32_1 = arith.constant 0 : i32
    return %c0_i32, %c0_i32_0 : i32, i32
  }
  func.func @transform_6(%arg0: i32) -> (i32, i32) {
    %c0_i32 = arith.constant 0 : i32
    %c0_i32_0 = arith.constant 0 : i32
    %c0_i32_1 = arith.constant 0 : i32
    return %c0_i32, %c0_i32_0 : i32, i32
  }
  func.func @transform_7(%arg0: i32) -> (i32, i32) {
    %c0_i32 = arith.constant 0 : i32
    %c0_i32_0 = arith.constant 0 : i32
    %c0_i32_1 = arith.constant 0 : i32
    return %c0_i32, %c0_i32_0 : i32, i32
  }
  func.func @transform_8(%arg0: i32) -> (i32, i32) {
    %c0_i32 = arith.constant 0 : i32
    %c0_i32_0 = arith.constant 0 : i32
    %c0_i32_1 = arith.constant 0 : i32
    return %c0_i32, %c0_i32_0 : i32, i32
  }
  func.func @transform_9(%arg0: i32) -> (i32, i32, i32) {
    %c0_i32 = arith.constant 0 : i32
    %c0_i32_0 = arith.constant 0 : i32
    %c0_i32_1 = arith.constant 0 : i32
    return %arg0, %c0_i32, %c0_i32_0 : i32, i32, i32
  }
}

</mosaic_0001>

<llo_original>
// kernel: tpu_custom_call.1
$region0: #{tpu_custom_call.1}
  #allocation0 [shape = 'u32[]', space=smem, size = 0x4, offset = 0x4, fixed_abs, tag = 'smem constant byte address 0x4 - core index']
  #allocation1 [shape = 'u32[144,128]{1,0:T(1,128)}', space=vmem, size = 0x12000, scoped, tag = 'internal scratch']
  %s0 = inlined_call_operand.vmem [shape: f32[2,4,256], index: 0, kind: input, shape index: {}]
  %s1 = inlined_call_operand.vmem [shape: f32[8,256], index: 1, kind: input, shape index: {}]
  %s2 = inlined_call_operand.vmem [shape: f32[4,1], index: 2, kind: input, shape index: {}]
  %s3 = inlined_call_operand.vmem [shape: f32[4,1], index: 3, kind: input, shape index: {}]
  %s4 = inlined_call_operand.vmem [shape: f32[4,1], index: 4, kind: input, shape index: {}]
  %s5 = inlined_call_operand.vmem [shape: bf16[16,4], index: 5, kind: input, shape index: {}]
  %s6 = inlined_call_operand.vmem [shape: f32[16,1], index: 6, kind: input, shape index: {}]
  %s7 = inlined_call_operand.vmem [shape: bf16[4,16], index: 7, kind: input, shape index: {}]
  %s8 = inlined_call_operand.vmem [shape: f32[4,1], index: 8, kind: input, shape index: {}]
  %s9 = inlined_call_operand.hbm [shape: f32[2,4,256], index: 9, kind: output, shape index: {}]
  %s10 = sld [smem:[#allocation0]]
  $region69: #{tpu_custom_call.1} parent=0
    _
  %s12 = ssub.s32 1, %s10
  %s13 = scalar_select 0, %s12, %s10
  $region1: #{tpu_custom_call.1} parent=0
    #allocation2 [shape = 'u8[8192]{0}', space=vmem, size = 0x2000, scoped, tag = 'output window, operand 0']
    #allocation3 [shape = 's32[2]{0}', space=sflag, size = 0x8, scoped, tag = 'scoped memory for tpu_custom_call.1']
    %14 = vsyncpa [#allocation3], 0
    %s15 = scalar_lea.sflag [#allocation3], 1
    %16 = vsyncpa %s15, 0
    loop: start=0, step=1, limit=4
    $region2: #{tpu_custom_call.1} parent=1 // loop_pre_header
      _
    $region3: #{tpu_custom_call.1} parent=1 // loop_header
      %s18 = sphi 0, %s22
      %p19 = scmp.ge.s32.totalorder %s18, 4
      %s28 = sphi 0, %s30
      %s31 = sphi 0, %s28
      %s32 = sphi 0, %s31
      %s48 = sphi 0, %s32
      %s52 = sphi 0, %s52
      %s54 = sphi 0, %s52
      %s55 = sphi 0, %s54
      %s69 = sphi 0, %s55
      %s73 = sphi 0, %s73
      %s75 = sphi 0, %s73
      %s76 = sphi 0, %s75
      %s90 = sphi 0, %s76
      %s94 = sphi 0, %s94
      %s96 = sphi 0, %s94
      %s97 = sphi 0, %s96
      %s111 = sphi 0, %s97
      %s115 = sphi 0, %s115
      %s117 = sphi 0, %s115
      %s118 = sphi 0, %s117
      %s132 = sphi 0, %s118
      %s136 = sphi 0, %s136
      %s138 = sphi 0, %s136
      %s139 = sphi 0, %s138
      %s153 = sphi 0, %s139
      %s157 = sphi 0, %s157
      %s159 = sphi 0, %s157
      %s160 = sphi 0, %s159
      %s174 = sphi 0, %s160
      %s178 = sphi 0, %s178
      %s180 = sphi 0, %s178
      %s181 = sphi 0, %s180
      %s195 = sphi 0, %s181
      %s199 = sphi 0, %s199
      %s201 = sphi 0, %s199
      %s202 = sphi 0, %s201
      %s216 = sphi 0, %s202
      %s222 = sphi 0, %s224
      %s225 = sphi 0, %s222
      %s226 = sphi 0, %s225
      %s242 = sphi 0, %s226
    $region4: #{tpu_custom_call.1} parent=1 // loop_header_branch
      %21 = sbr.rel (%p19) target = $region8
    $region5: #{tpu_custom_call.1} parent=1 // loop_body
      %s23 = ssub.s32 %s18, 1
      %s24 = ssub.s32 %s18, 2
      %s25 = sadd.s32 %s18, 1
      %s26 = ssub.s32 %s18, %s25
      %p27 = scmp.eq.s32.totalorder %s26, 0
      %s29 = sadd.s32 %s28, 1
      %s30 = scalar_select %p27, %s28, %s29
      %p33 = pneg %p27
      %p34 = scmp.eq.s32.totalorder %s18, 1
      %p35 = por %p33, %p34
      %p36 = scmp.ne.s32.totalorder %s28, %s31
      %p37 = scmp.eq.s32.totalorder %s18, 0
      %p38 = por %p36, %p37
      %p39 = scmp.ne.s32.totalorder %s28, %s31
      %p40 = scmp.eq.s32.totalorder %s23, 1
      %p41 = por %p39, %p40
      %p42 = scmp.ne.s32.totalorder %s31, %s32
      %p43 = scmp.eq.s32.totalorder %s23, 0
      %p44 = por %p42, %p43
      %p45 = scmp.ne.s32.totalorder %s31, %s32
      %p46 = scmp.eq.s32.totalorder %s24, 1
      %p47 = por %p45, %p46
      %p49 = scmp.ne.s32.totalorder %s32, %s48
      %p50 = scmp.eq.s32.totalorder %s24, 0
      %p51 = por %p49, %p50
      %s53 = sadd.s32 %s52, 1
      %p56 = scmp.eq.s32.totalorder %s18, 1
      %p57 = scmp.ne.s32.totalorder %s52, %s54
      %p58 = scmp.eq.s32.totalorder %s18, 0
      %p59 = por %p57, %p58
      %p60 = scmp.ne.s32.totalorder %s52, %s54
      %p61 = scmp.eq.s32.totalorder %s23, 1
      %p62 = por %p60, %p61
      %p63 = scmp.ne.s32.totalorder %s54, %s55
      %p64 = scmp.eq.s32.totalorder %s23, 0
      %p65 = por %p63, %p64
      %p66 = scmp.ne.s32.totalorder %s54, %s55
      %p67 = scmp.eq.s32.totalorder %s24, 1
      %p68 = por %p66, %p67
      %p70 = scmp.ne.s32.totalorder %s55, %s69
      %p71 = scmp.eq.s32.totalorder %s24, 0
      %p72 = por %p70, %p71
      %s74 = sadd.s32 %s73, 1
      %p77 = scmp.eq.s32.totalorder %s18, 1
      %p78 = scmp.ne.s32.totalorder %s73, %s75
      %p79 = scmp.eq.s32.totalorder %s18, 0
      %p80 = por %p78, %p79
      %p81 = scmp.ne.s32.totalorder %s73, %s75
      %p82 = scmp.eq.s32.totalorder %s23, 1
      %p83 = por %p81, %p82
      %p84 = scmp.ne.s32.totalorder %s75, %s76
      %p85 = scmp.eq.s32.totalorder %s23, 0
      %p86 = por %p84, %p85
      %p87 = scmp.ne.s32.totalorder %s75, %s76
      %p88 = scmp.eq.s32.totalorder %s24, 1
      %p89 = por %p87, %p88
      %p91 = scmp.ne.s32.totalorder %s76, %s90
      %p92 = scmp.eq.s32.totalorder %s24, 0
      %p93 = por %p91, %p92
      %s95 = sadd.s32 %s94, 1
      %p98 = scmp.eq.s32.totalorder %s18, 1
      %p99 = scmp.ne.s32.totalorder %s94, %s96
      %p100 = scmp.eq.s32.totalorder %s18, 0
      %p101 = por %p99, %p100
      %p102 = scmp.ne.s32.totalorder %s94, %s96
      %p103 = scmp.eq.s32.totalorder %s23, 1
      %p104 = por %p102, %p103
      %p105 = scmp.ne.s32.totalorder %s96, %s97
      %p106 = scmp.eq.s32.totalorder %s23, 0
      %p107 = por %p105, %p106
      %p108 = scmp.ne.s32.totalorder %s96, %s97
      %p109 = scmp.eq.s32.totalorder %s24, 1
      %p110 = por %p108, %p109
      %p112 = scmp.ne.s32.totalorder %s97, %s111
      %p113 = scmp.eq.s32.totalorder %s24, 0
      %p114 = por %p112, %p113
      %s116 = sadd.s32 %s115, 1
      %p119 = scmp.eq.s32.totalorder %s18, 1
      %p120 = scmp.ne.s32.totalorder %s115, %s117
      %p121 = scmp.eq.s32.totalorder %s18, 0
      %p122 = por %p120, %p121
      %p123 = scmp.ne.s32.totalorder %s115, %s117
      %p124 = scmp.eq.s32.totalorder %s23, 1
      %p125 = por %p123, %p124
      %p126 = scmp.ne.s32.totalorder %s117, %s118
      %p127 = scmp.eq.s32.totalorder %s23, 0
      %p128 = por %p126, %p127
      %p129 = scmp.ne.s32.totalorder %s117, %s118
      %p130 = scmp.eq.s32.totalorder %s24, 1
      %p131 = por %p129, %p130
      %p133 = scmp.ne.s32.totalorder %s118, %s132
      %p134 = scmp.eq.s32.totalorder %s24, 0
      %p135 = por %p133, %p134
      %s137 = sadd.s32 %s136, 1
      %p140 = scmp.eq.s32.totalorder %s18, 1
      %p141 = scmp.ne.s32.totalorder %s136, %s138
      %p142 = scmp.eq.s32.totalorder %s18, 0
      %p143 = por %p141, %p142
      %p144 = scmp.ne.s32.totalorder %s136, %s138
      %p145 = scmp.eq.s32.totalorder %s23, 1
      %p146 = por %p144, %p145
      %p147 = scmp.ne.s32.totalorder %s138, %s139
      %p148 = scmp.eq.s32.totalorder %s23, 0
      %p149 = por %p147, %p148
      %p150 = scmp.ne.s32.totalorder %s138, %s139
      %p151 = scmp.eq.s32.totalorder %s24, 1
      %p152 = por %p150, %p151
      %p154 = scmp.ne.s32.totalorder %s139, %s153
      %p155 = scmp.eq.s32.totalorder %s24, 0
      %p156 = por %p154, %p155
      %s158 = sadd.s32 %s157, 1
      %p161 = scmp.eq.s32.totalorder %s18, 1
      %p162 = scmp.ne.s32.totalorder %s157, %s159
      %p163 = scmp.eq.s32.totalorder %s18, 0
      %p164 = por %p162, %p163
      %p165 = scmp.ne.s32.totalorder %s157, %s159
      %p166 = scmp.eq.s32.totalorder %s23, 1
      %p167 = por %p165, %p166
      %p168 = scmp.ne.s32.totalorder %s159, %s160
      %p169 = scmp.eq.s32.totalorder %s23, 0
      %p170 = por %p168, %p169
      %p171 = scmp.ne.s32.totalorder %s159, %s160
      %p172 = scmp.eq.s32.totalorder %s24, 1
      %p173 = por %p171, %p172
      %p175 = scmp.ne.s32.totalorder %s160, %s174
      %p176 = scmp.eq.s32.totalorder %s24, 0
      %p177 = por %p175, %p176
      %s179 = sadd.s32 %s178, 1
      %p182 = scmp.eq.s32.totalorder %s18, 1
      %p183 = scmp.ne.s32.totalorder %s178, %s180
      %p184 = scmp.eq.s32.totalorder %s18, 0
      %p185 = por %p183, %p184
      %p186 = scmp.ne.s32.totalorder %s178, %s180
      %p187 = scmp.eq.s32.totalorder %s23, 1
      %p188 = por %p186, %p187
      %p189 = scmp.ne.s32.totalorder %s180, %s181
      %p190 = scmp.eq.s32.totalorder %s23, 0
      %p191 = por %p189, %p190
      %p192 = scmp.ne.s32.totalorder %s180, %s181
      %p193 = scmp.eq.s32.totalorder %s24, 1
      %p194 = por %p192, %p193
      %p196 = scmp.ne.s32.totalorder %s181, %s195
      %p197 = scmp.eq.s32.totalorder %s24, 0
      %p198 = por %p196, %p197
      %s200 = sadd.s32 %s199, 1
      %p203 = scmp.eq.s32.totalorder %s18, 1
      %p204 = scmp.ne.s32.totalorder %s199, %s201
      %p205 = scmp.eq.s32.totalorder %s18, 0
      %p206 = por %p204, %p205
      %p207 = scmp.ne.s32.totalorder %s199, %s201
      %p208 = scmp.eq.s32.totalorder %s23, 1
      %p209 = por %p207, %p208
      %p210 = scmp.ne.s32.totalorder %s201, %s202
      %p211 = scmp.eq.s32.totalorder %s23, 0
      %p212 = por %p210, %p211
      %p213 = scmp.ne.s32.totalorder %s201, %s202
      %p214 = scmp.eq.s32.totalorder %s24, 1
      %p215 = por %p213, %p214
      %p217 = scmp.ne.s32.totalorder %s202, %s216
      %p218 = scmp.eq.s32.totalorder %s24, 0
      %p219 = por %p217, %p218
      %s220 = ssub.s32 %s18, %s25
      %p221 = scmp.eq.s32.totalorder %s220, 0
      %s223 = sadd.s32 %s222, 1
      %s224 = scalar_select %p221, %s222, %s223
      %p227 = pneg %p221
      %p228 = scmp.eq.s32.totalorder %s18, 1
      %p229 = por %p227, %p228
      %p230 = scmp.ne.s32.totalorder %s222, %s225
      %p231 = scmp.eq.s32.totalorder %s18, 0
      %p232 = por %p230, %p231
      %p233 = scmp.ne.s32.totalorder %s222, %s225
      %p234 = scmp.eq.s32.totalorder %s23, 1
      %p235 = por %p233, %p234
      %p236 = scmp.ne.s32.totalorder %s225, %s226
      %p237 = scmp.eq.s32.totalorder %s23, 0
      %p238 = por %p236, %p237
      %p239 = scmp.ne.s32.totalorder %s225, %s226
      %p240 = scmp.eq.s32.totalorder %s24, 1
      %p241 = por %p239, %p240
      %p243 = scmp.ne.s32.totalorder %s226, %s242
      %p244 = scmp.eq.s32.totalorder %s24, 0
      %p245 = por %p243, %p244
      %p246 = scmp.le.s32.totalorder 1, %s18
      %p247 = scmp.lt.s32.totalorder %s18, 3
      %p248 = pnand %p246, %p247
      %p249 = pneg %p248
      // Predicated region
      $region9: #{tpu_custom_call.1} parent=5 // pred_check
        _
      $region10: #{tpu_custom_call.1} parent=5 // pred_check_branch
        %251 = sbr.rel (%p248) target = $region12
      $region11: #{tpu_custom_call.1} parent=5 // pred_region
        %s252 = ssub.s32 %s18, 1
        // Predicated region
        $region13: #{tpu_custom_call.1} parent=11 // pred_check
          %p253 = pneg %p65
        $region14: #{tpu_custom_call.1} parent=11 // pred_check_branch
          %255 = sbr.rel (%p253) target = $region16
        $region15: #{tpu_custom_call.1} parent=11 // pred_region
          _
        $region16: #{tpu_custom_call.1} parent=11 // pred_fallthru
          _
        // Predicated region
        $region17: #{tpu_custom_call.1} parent=11 // pred_check
          %p256 = pneg %p86
        $region18: #{tpu_custom_call.1} parent=11 // pred_check_branch
          %258 = sbr.rel (%p256) target = $region20
        $region19: #{tpu_custom_call.1} parent=11 // pred_region
          _
        $region20: #{tpu_custom_call.1} parent=11 // pred_fallthru
          _
        // Predicated region
        $region21: #{tpu_custom_call.1} parent=11 // pred_check
          %p259 = pneg %p107
        $region22: #{tpu_custom_call.1} parent=11 // pred_check_branch
          %261 = sbr.rel (%p259) target = $region24
        $region23: #{tpu_custom_call.1} parent=11 // pred_region
          _
        $region24: #{tpu_custom_call.1} parent=11 // pred_fallthru
          _
        // Predicated region
        $region25: #{tpu_custom_call.1} parent=11 // pred_check
          %p262 = pneg %p128
        $region26: #{tpu_custom_call.1} parent=11 // pred_check_branch
          %264 = sbr.rel (%p262) target = $region28
        $region27: #{tpu_custom_call.1} parent=11 // pred_region
          _
        $region28: #{tpu_custom_call.1} parent=11 // pred_fallthru
          _
        // Predicated region
        $region29: #{tpu_custom_call.1} parent=11 // pred_check
          %p265 = pneg %p149
        $region30: #{tpu_custom_call.1} parent=11 // pred_check_branch
          %267 = sbr.rel (%p265) target = $region32
        $region31: #{tpu_custom_call.1} parent=11 // pred_region
          _
        $region32: #{tpu_custom_call.1} parent=11 // pred_fallthru
          _
        // Predicated region
        $region33: #{tpu_custom_call.1} parent=11 // pred_check
          %p268 = pneg %p170
        $region34: #{tpu_custom_call.1} parent=11 // pred_check_branch
          %270 = sbr.rel (%p268) target = $region36
        $region35: #{tpu_custom_call.1} parent=11 // pred_region
          _
        $region36: #{tpu_custom_call.1} parent=11 // pred_fallthru
          _
        // Predicated region
        $region37: #{tpu_custom_call.1} parent=11 // pred_check
          %p271 = pneg %p191
        $region38: #{tpu_custom_call.1} parent=11 // pred_check_branch
          %273 = sbr.rel (%p271) target = $region40
        $region39: #{tpu_custom_call.1} parent=11 // pred_region
          _
        $region40: #{tpu_custom_call.1} parent=11 // pred_fallthru
          _
        // Predicated region
        $region41: #{tpu_custom_call.1} parent=11 // pred_check
          %p274 = pneg %p212
        $region42: #{tpu_custom_call.1} parent=11 // pred_check_branch
          %276 = sbr.rel (%p274) target = $region44
        $region43: #{tpu_custom_call.1} parent=11 // pred_region
          _
        $region44: #{tpu_custom_call.1} parent=11 // pred_fallthru
          _
      $region12: #{tpu_custom_call.1} parent=5 // pred_fallthru
        _
      %p277 = scmp.lt.s32.totalorder %s18, 2
      // Predicated region
      $region45: #{tpu_custom_call.1} parent=5 // pred_check
        %p278 = pneg %p277
      $region46: #{tpu_custom_call.1} parent=5 // pred_check_branch
        %280 = sbr.rel (%p278) target = $region48
      $region47: #{tpu_custom_call.1} parent=5 // pred_region
        // Predicated region
        $region49: #{tpu_custom_call.1} parent=47 // pred_check
          %p281 = pneg %p38
        $region50: #{tpu_custom_call.1} parent=47 // pred_check_branch
          %283 = sbr.rel (%p281) target = $region52
        $region51: #{tpu_custom_call.1} parent=47 // pred_region
          %p284 = scmp.lt.s32.totalorder %s18, 1
          %s285 = scalar_select %p284, %s18, 1
          %s286 = smul.addr %s285, 2
          %s287 = smul.addr %s286, 4
          %s288 = scalar_lea.vmem %s0, %s287
        $region52: #{tpu_custom_call.1} parent=47 // pred_fallthru
          _
      $region48: #{tpu_custom_call.1} parent=5 // pred_fallthru
        _
      %p289 = scmp.le.s32.totalorder 1, %s18
      %p290 = scmp.lt.s32.totalorder %s18, 3
      %p291 = pnand %p289, %p290
      %p292 = pneg %p291
      // Predicated region
      $region53: #{tpu_custom_call.1} parent=5 // pred_check
        _
      $region54: #{tpu_custom_call.1} parent=5 // pred_check_branch
        %294 = sbr.rel (%p291) target = $region56
      $region55: #{tpu_custom_call.1} parent=5 // pred_region
        %s295 = ssub.s32 %s18, 1
        %p296 = scmp.lt.s32.totalorder %s23, 1
        %s297 = scalar_select %p296, %s23, 1
        %s298 = smul.addr %s297, 2
        %s299 = smul.addr %s298, 4
        %s300 = scalar_lea.vmem %s0, %s299
        %p301 = pneg %p44
        %p302 = pneg %p41
        %p303 = pneg %p65
        %p304 = pneg %p62
        %p305 = pneg %p86
        %p306 = pneg %p83
        %p307 = pneg %p107
        %p308 = pneg %p104
        %p309 = pneg %p128
        %p310 = pneg %p125
        %p311 = pneg %p149
        %p312 = pneg %p146
        %p313 = pneg %p170
        %p314 = pneg %p167
        %p315 = pneg %p191
        %p316 = pneg %p188
        %p317 = pneg %p212
        %p318 = pneg %p209
        %p319 = pneg %p238
        %p320 = pneg %p235
        %s321 = sand.u32 %s225, 1
        %s322 = scalar_lea.sflag [#allocation3], %s321
        %s323 = sand.u32 %s225, 1
        %s324 = smul.addr %s323, 8
        %s325 = scalar_lea.vmem [#allocation2], %s324
        %p326 = scmp.lt.s32.totalorder %s23, 1
        %s327 = scalar_select %p326, %s23, 1
        %s328 = smul.addr %s327, 2
        %s329 = smul.addr %s328, 4
        %s330 = scalar_lea.vmem %s0, %s329
        %v332 = vld [vmem:[%s330] sm:$0xff]
        %v333 = vld [vmem:[%s1] sm:$0xff]
        %v334 = vld [vmem:[%s1 + $0x8] sm:$0xff]
        %v336 = vcombine.high %v332, %v332
        %vm338 = vcmask 1043456
        %v339 = vsel %vm338, %v332, 0.0
        %v340 = vsel %vm338, %v336, 0.0
        %v341 = vadd.f32 %v339, %v340
        %342 = vadd.xlane.f32.xlu0 %v341
        %v343 = vpop.xlane.xlu0 %342
        %v344 = vrot.slane %v343, 4
        %v345 = vadd.f32 %v343, %v344
        %v346 = vrot.slane %v345, 2
        %v347 = vadd.f32 %v345, %v346
        %v348 = vrot.slane %v347, 1
        %v349 = vadd.f32 %v347, %v348
        %s350 = vtos %v349
        %s351 = smul.f32 %s350, 0.0009765625
        %v352 = vmul.f32 %v332, %v332
        %v354 = vcombine.high %v352, %v352
        %v356 = vsel %vm338, %v352, 0.0
        %v357 = vsel %vm338, %v354, 0.0
        %v358 = vadd.f32 %v356, %v357
        %359 = vadd.xlane.f32.xlu0 %v358
        %v360 = vpop.xlane.xlu0 %359
        %v361 = vrot.slane %v360, 4
        %v362 = vadd.f32 %v360, %v361
        %v363 = vrot.slane %v362, 2
        %v364 = vadd.f32 %v362, %v363
        %v365 = vrot.slane %v364, 1
        %v366 = vadd.f32 %v364, %v365
        %s367 = vtos %v366
        %s368 = smul.f32 %s367, 0.0009765625
        %s369 = smul.f32 %s351, %s351
        %s370 = ssub.f32 %s368, %s369
        %v371 = vld [vmem:[%s2] sm:$0xf]
        %s372 = sadd.f32 %s370, 1e-05
        %v373 = vstv %s372
        %v374 = vrsqrt.pop %v373
        %s375 = vtos %v374
        %v376 = vstv %s375
        %v377 = vmul.f32 %v371, %v376
        %378 = vrot.lane.b32.xlu0 %v332, 1
        %v379 = vpop.permute.xlu0 %378
        %380 = vrot.lane.b32.xlu0 %v336, 1
        %v381 = vpop.permute.xlu0 %380
        %v382 = vlaneseq
        %v383 = vand.u32 %v382, 127
        %vm384 = vcmp.lt.s32.totalorder %v383, 1
        %v385 = vsel %vm384, %v379, %v381
        %v386 = vsel %vm384, %v381, %v379
        %v387 = vlaneseq
        %v388 = vshrl.u32 %v387, 7
        %v389 = vsub.s32 0, %v388
        %v390 = vrot.slane %v333, %v389
        %v391 = vlaneseq
        %v392 = vshrl.u32 %v391, 7
        %v393 = vsub.s32 0, %v392
        %v394 = vrot.slane %v334, %v393
        %v395 = vmul.f32 %v390, %v386
        %v396 = vmul.f32 %v394, %v385
        %v399 = vcombine.low %v395, %v396
        %v401 = vadd.f32 %v332, %v399
        %402 = vrot.lane.b32.xlu0 %v332, 127
        %v403 = vpop.permute.xlu0 %402
        %404 = vrot.lane.b32.xlu0 %v336, 127
        %v405 = vpop.permute.xlu0 %404
        %vm406 = vcmp.lt.s32.totalorder %v383, 127
        %v407 = vsel %vm406, %v403, %v405
        %v408 = vsel %vm406, %v405, %v403
        %v409 = vlaneseq
        %v410 = vshrl.u32 %v409, 7
        %v411 = vsub.s32 1, %v410
        %v412 = vrot.slane %v333, %v411
        %v413 = vlaneseq
        %v414 = vshrl.u32 %v413, 7
        %v415 = vsub.s32 1, %v414
        %v416 = vrot.slane %v334, %v415
        %v417 = vmul.f32 %v412, %v407
        %v418 = vmul.f32 %v416, %v408
        %v421 = vcombine.low %v417, %v418
        %v423 = vadd.f32 %v401, %v421
        %v425 = vcombine.high %v423, %v423
        %427 = vrot.lane.b32.xlu0 %v423, 16
        %v428 = vpop.permute.xlu0 %427
        %429 = vrot.lane.b32.xlu0 %v425, 16
        %v430 = vpop.permute.xlu0 %429
        %vm431 = vcmp.lt.s32.totalorder %v383, 16
        %v432 = vsel %vm431, %v428, %v430
        %v433 = vsel %vm431, %v430, %v428
        %v434 = vlaneseq
        %v435 = vshrl.u32 %v434, 7
        %v436 = vsub.s32 2, %v435
        %v437 = vrot.slane %v333, %v436
        %v438 = vlaneseq
        %v439 = vshrl.u32 %v438, 7
        %v440 = vsub.s32 2, %v439
        %v441 = vrot.slane %v334, %v440
        %v442 = vmul.f32 %v437, %v433
        %v443 = vmul.f32 %v441, %v432
        %v446 = vcombine.low %v442, %v443
        %v448 = vadd.f32 %v423, %v446
        %449 = vrot.lane.b32.xlu0 %v423, 112
        %v450 = vpop.permute.xlu0 %449
        %451 = vrot.lane.b32.xlu0 %v425, 112
        %v452 = vpop.permute.xlu0 %451
        %vm453 = vcmp.lt.s32.totalorder %v383, 112
        %v454 = vsel %vm453, %v450, %v452
        %v455 = vsel %vm453, %v452, %v450
        %v456 = vlaneseq
        %v457 = vshrl.u32 %v456, 7
        %v458 = vsub.s32 3, %v457
        %v459 = vrot.slane %v333, %v458
        %v460 = vlaneseq
        %v461 = vshrl.u32 %v460, 7
        %v462 = vsub.s32 3, %v461
        %v463 = vrot.slane %v334, %v462
        %v464 = vmul.f32 %v459, %v454
        %v465 = vmul.f32 %v463, %v455
        %v468 = vcombine.low %v464, %v465
        %v470 = vadd.f32 %v448, %v468
        %v471 = vlaneseq
        %v472 = vshrl.u32 %v471, 7
        %v473 = vsub.s32 4, %v472
        %v474 = vrot.slane %v333, %v473
        %v475 = vlaneseq
        %v476 = vshrl.u32 %v475, 7
        %v477 = vsub.s32 4, %v476
        %v478 = vrot.slane %v334, %v477
        %v481 = vcombine.low %v474, %v478
        %v483 = vmul.f32 %v470, %v481
        %v484 = vsub.f32 %v483, %v332
        %486 = vset.pattern.permute.xlu0 0
        %487 = vperm.xlu0 %486, %v377
        %v488 = vpop.permute.xlu0 %487
        %v491 = vcombine.high %v484, %v484
        %v493 = vmul.f32 %v488, %v484
        %v494 = vmul.f32 %v488, %v491
        %v497 = vcombine.low %v493, %v494
        %v499 = vadd.f32 %v332, %v497
        %v501 = vcombine.high %v499, %v499
        %v503 = vsel %vm338, %v499, 0.0
        %v504 = vsel %vm338, %v501, 0.0
        %v505 = vadd.f32 %v503, %v504
        %506 = vadd.xlane.f32.xlu0 %v505
        %v507 = vpop.xlane.xlu0 %506
        %v508 = vrot.slane %v507, 4
        %v509 = vadd.f32 %v507, %v508
        %v510 = vrot.slane %v509, 2
        %v511 = vadd.f32 %v509, %v510
        %v512 = vrot.slane %v511, 1
        %v513 = vadd.f32 %v511, %v512
        %s514 = vtos %v513
        %s515 = smul.f32 %s514, 0.0009765625
        %v516 = vmul.f32 %v499, %v499
        %v518 = vcombine.high %v516, %v516
        %v520 = vsel %vm338, %v516, 0.0
        %v521 = vsel %vm338, %v518, 0.0
        %v522 = vadd.f32 %v520, %v521
        %523 = vadd.xlane.f32.xlu0 %v522
        %v524 = vpop.xlane.xlu0 %523
        %v525 = vrot.slane %v524, 4
        %v526 = vadd.f32 %v524, %v525
        %v527 = vrot.slane %v526, 2
        %v528 = vadd.f32 %v526, %v527
        %v529 = vrot.slane %v528, 1
        %v530 = vadd.f32 %v528, %v529
        %s531 = vtos %v530
        %s532 = smul.f32 %s531, 0.0009765625
        %s533 = smul.f32 %s515, %s515
        %s534 = ssub.f32 %s532, %s533
        %v535 = vld [vmem:[%s3] sm:$0xf]
        %s536 = sadd.f32 %s534, 1e-05
        %v537 = vstv %s536
        %v538 = vrsqrt.pop %v537
        %s539 = vtos %v538
        %v540 = vstv %s539
        %v541 = vmul.f32 %v535, %v540
        %v542 = vld [vmem:[%s4] sm:$0xf]
        %v543 = vstv %s515
        %v544 = vmul.f32 %v543, %v541
        %v545 = vsub.f32 %v542, %v544
        %547 = vset.pattern.permute.xlu0 0
        %548 = vperm.xlu0 %547, %v541
        %v549 = vpop.permute.xlu0 %548
        %v551 = vunpack.c.l.s4 839922192
        %v552 = vunpack.c.0.s8 %v551
        %v553 = vlaneseq
        %v554 = vshrl.u32 %v553, 7
        %v555 = vsub.s32 %v552, %v554
        %v556 = vrot.slane %v549, %v555
        %v558 = vmul.f32 %v499, %v556
        %560 = vset.pattern.permute.xlu0 0
        %561 = vperm.xlu0 %560, %v545
        %v562 = vpop.permute.xlu0 %561
        %v564 = vunpack.c.l.s4 839922192
        %v565 = vunpack.c.0.s8 %v564
        %v566 = vlaneseq
        %v567 = vshrl.u32 %v566, 7
        %v568 = vsub.s32 %v565, %v567
        %v569 = vrot.slane %v562, %v568
        %v571 = vadd.f32 %v558, %v569
        %v573 = vcombine.high %v571, %v571
        %v575 = vpack.c.bf16 %v571, %v571
        %v576 = vpack.c.bf16 %v573, %v573
        %v577 = vld [vmem:[%s5] sm:$0xf]
        %v578 = vld [vmem:[%s5 + $0x4] sm:$0xf]
        %v579 = vld [vmem:[%s7] sm:$0x3]
        %v580 = vld [vmem:[%s6] sm:$0xff]
        %v581 = vld [vmem:[%s6 + $0x8] sm:$0xff]
        %v582 = vld [vmem:[%s8] sm:$0xf]
        %584 = vset.pattern.permute.xlu0 0
        %585 = vperm.xlu0 %584, %v580
        %v586 = vpop.permute.xlu0 %585
        %589 = vset.pattern.permute.xlu0 0
        %590 = vperm.xlu0 %589, %v581
        %v591 = vpop.permute.xlu0 %590
        %v595 = vunpack.c.l.b16 %v577
        %v596 = vunpack.c.l.b16 %v578
        %v597 = vpack.c.b16 %v596, %v595
        %vm598 = vcmask 31744
        %v600 = vsel %vm598, %v597, 0
        %vm602 = vcmask 1041408
        %v604 = vsel %vm602, %v575, 0
        %v607 = vsel %vm602, %v576, 0
        %609 = vmatprep.subr.bf16.mxu0 %v607
        %610 = vmatpush1.bf16.msra.mxu0 %v604
        %611 = vmatprep.subr.bf16.mxu0 0
        %612 = vmatpush1.bf16.msra.mxu0 0
        %613 = vmatprep.subr.bf16.mxu0 0
        %614 = vmatpush1.bf16.msra.mxu0 0
        %615 = vmatprep.subr.bf16.mxu0 0
        %616 = vmatpush1.bf16.msra.mxu0 0
        %617 = vmatprep.subr.bf16.mxu0 0
        %618 = vmatpush1.bf16.msra.mxu0 0
        %619 = vmatprep.subr.bf16.mxu0 0
        %620 = vmatpush1.bf16.msra.mxu0 0
        %621 = vmatprep.subr.bf16.mxu0 0
        %622 = vmatpush1.bf16.msra.mxu0 0
        %623 = vmatprep.subr.bf16.mxu0 0
        %624 = vmatpush1.bf16.msra.mxu0 0
        %625 = vmatprep.subr.bf16.mxu0 0
        %626 = vmatpush1.bf16.msra.mxu0 0
        %627 = vmatprep.subr.bf16.mxu0 0
        %628 = vmatpush1.bf16.msra.mxu0 0
        %629 = vmatprep.subr.bf16.mxu0 0
        %630 = vmatpush1.bf16.msra.mxu0 0
        %631 = vmatprep.subr.bf16.mxu0 0
        %632 = vmatpush1.bf16.msra.mxu0 0
        %633 = vmatprep.subr.bf16.mxu0 0
        %634 = vmatpush1.bf16.msra.mxu0 0
        %635 = vmatprep.subr.bf16.mxu0 0
        %636 = vmatpush1.bf16.msra.mxu0 0
        %637 = vmatprep.subr.bf16.mxu0 0
        %638 = vmatpush1.bf16.msra.mxu0 0
        %639 = vmatprep.subr.bf16.mxu0 0
        %640 = vmatpush1.bf16.msra.mxu0 0
        %641 = vmatprep.mubr.bf16.mxu0 0
        %642 = vmatmul.mubr.bf16.gmra.mrb[0].mxu0 %v600
        %v643 = vpop.f32.mrb[0].mxu0
        %v644 = vadd.f32 %v586, %v643
        %v645 = vpop.f32.mrb[0].mxu0
        %v646 = vadd.f32 %v586, %v645
        %v647 = vpop.f32.mrb[0].mxu0
        %v648 = vadd.f32 %v591, %v647
        %v649 = vpop.f32.mrb[0].mxu0
        %v650 = vadd.f32 %v591, %v649
        %651 = vdwg.mxu0
        %v652 = vmul.f32 %v644, 0.5
        %v653 = vmul.f32 %v646, 0.5
        %v654 = vmul.f32 %v648, 0.5
        %v655 = vmul.f32 %v650, 0.5
        %v656 = vmul.f32 %v644, 0.70710677
        %v657 = vmul.f32 %v646, 0.70710677
        %v658 = vmul.f32 %v648, 0.70710677
        %v659 = vmul.f32 %v650, 0.70710677
        %v660 = verf.f32.pop %v656
        %v661 = verf.f32.pop %v657
        %v662 = verf.f32.pop %v658
        %v663 = verf.f32.pop %v659
        %v664 = vadd.f32 %v660, 1.0
        %v665 = vadd.f32 %v661, 1.0
        %v666 = vadd.f32 %v662, 1.0
        %v667 = vadd.f32 %v663, 1.0
        %v668 = vmul.f32 %v652, %v664
        %v669 = vmul.f32 %v653, %v665
        %v670 = vmul.f32 %v654, %v666
        %v671 = vmul.f32 %v655, %v667
        %v672 = vpack.c.bf16 %v670, %v668
        %v673 = vpack.c.bf16 %v671, %v669
        %675 = vset.pattern.permute.xlu0 0
        %676 = vperm.xlu0 %675, %v582
        %v677 = vpop.permute.xlu0 %676
        %vm679 = vcmask 130048
        %v681 = vsel %vm679, %v579, 0
        %683 = vmatprep.subr.bf16.mxu0 %v673
        %684 = vmatpush1.bf16.msra.mxu0 %v672
        %685 = vmatprep.subr.bf16.mxu0 0
        %686 = vmatpush1.bf16.msra.mxu0 0
        %687 = vmatprep.subr.bf16.mxu0 0
        %688 = vmatpush1.bf16.msra.mxu0 0
        %689 = vmatprep.subr.bf16.mxu0 0
        %690 = vmatpush1.bf16.msra.mxu0 0
        %691 = vmatprep.subr.bf16.mxu0 0
        %692 = vmatpush1.bf16.msra.mxu0 0
        %693 = vmatprep.subr.bf16.mxu0 0
        %694 = vmatpush1.bf16.msra.mxu0 0
        %695 = vmatprep.subr.bf16.mxu0 0
        %696 = vmatpush1.bf16.msra.mxu0 0
        %697 = vmatprep.subr.bf16.mxu0 0
        %698 = vmatpush1.bf16.msra.mxu0 0
        %699 = vmatprep.subr.bf16.mxu0 0
        %700 = vmatpush1.bf16.msra.mxu0 0
        %701 = vmatprep.subr.bf16.mxu0 0
        %702 = vmatpush1.bf16.msra.mxu0 0
        %703 = vmatprep.subr.bf16.mxu0 0
        %704 = vmatpush1.bf16.msra.mxu0 0
        %705 = vmatprep.subr.bf16.mxu0 0
        %706 = vmatpush1.bf16.msra.mxu0 0
        %707 = vmatprep.subr.bf16.mxu0 0
        %708 = vmatpush1.bf16.msra.mxu0 0
        %709 = vmatprep.subr.bf16.mxu0 0
        %710 = vmatpush1.bf16.msra.mxu0 0
        %711 = vmatprep.subr.bf16.mxu0 0
        %712 = vmatpush1.bf16.msra.mxu0 0
        %713 = vmatprep.subr.bf16.mxu0 0
        %714 = vmatpush1.bf16.msra.mxu0 0
        %715 = vmatprep.mubr.bf16.mxu0 0
        %716 = vmatmul.mubr.bf16.gmra.mrb[0].mxu0 %v681
        %v717 = vpop.f32.mrb[0].mxu0
        %v718 = vadd.f32 %v677, %v717
        %v719 = vpop.f32.mrb[0].mxu0
        %v720 = vadd.f32 %v677, %v719
        %v721 = vpop.f32.mrb[0].mxu0
        %v722 = vpop.f32.mrb[0].mxu0
        %723 = vdwg.mxu0
        %v726 = vcombine.low %v718, %v720
        %v728 = vadd.f32 %v499, %v726
        %729 = vst [vmem:[%s325] sm:$0xff] %v728
        %s730 = sand.u32 %s225, 1
        %s731 = scalar_lea.sflag [#allocation3], %s730
        %s732 = sand.u32 %s225, 1
        %s733 = smul.addr %s732, 8
        %s734 = scalar_lea.vmem [#allocation2], %s733
        // Predicated region
        $region57: #{tpu_custom_call.1} parent=55 // pred_check
          %p735 = pneg %p235
        $region58: #{tpu_custom_call.1} parent=55 // pred_check_branch
          %737 = sbr.rel (%p735) target = $region60
        $region59: #{tpu_custom_call.1} parent=55 // pred_region
          %s739 = ssub.s32 128, 128
          %740 = vsyncadd %s731, %s739
          %s741 = smul.addr %s23, 2
          %s742 = smul.addr %s741, 64
          %s743 = scalar_lea.hbm %s9, %s742
          %s745 = sshll.u32 %s734, 4
          %s746 = int_to_ptr.vmem [resolvable:$true] %s745
          %748 = dma.vmem_to_hbm [thread:$0]  %s746, 128, %s743, %s731
        $region60: #{tpu_custom_call.1} parent=55 // pred_fallthru
          _
      $region56: #{tpu_custom_call.1} parent=5 // pred_fallthru
        _
      %p749 = scmp.le.s32.totalorder 2, %s18
      // Predicated region
      $region61: #{tpu_custom_call.1} parent=5 // pred_check
        %p750 = pneg %p749
      $region62: #{tpu_custom_call.1} parent=5 // pred_check_branch
        %752 = sbr.rel (%p750) target = $region64
      $region63: #{tpu_custom_call.1} parent=5 // pred_region
        %s753 = ssub.s32 %s18, 2
        // Predicated region
        $region65: #{tpu_custom_call.1} parent=63 // pred_check
          %p754 = pneg %p241
        $region66: #{tpu_custom_call.1} parent=63 // pred_check_branch
          %756 = sbr.rel (%p754) target = $region68
        $region67: #{tpu_custom_call.1} parent=63 // pred_region
          %s757 = sand.u32 %s226, 1
          %s758 = scalar_lea.sflag [#allocation3], %s757
          %s759 = sand.u32 %s226, 1
          %s760 = smul.addr %s759, 8
          %s761 = scalar_lea.vmem [#allocation2], %s760
          %762 = dma.done %s758, 128
        $region68: #{tpu_custom_call.1} parent=63 // pred_fallthru
          _
      $region64: #{tpu_custom_call.1} parent=5 // pred_fallthru
        _
    $region6: #{tpu_custom_call.1} parent=1 // loop_footer
      %s22 = sadd.s32 1, %s18
    $region7: #{tpu_custom_call.1} parent=1 // loop_footer_branch
      %17 = sbr.rel target = $region3
    $region8: #{tpu_custom_call.1} parent=1 // loop_exit
      _
    %763 = vsyncpa [#allocation3], 1
    %s764 = scalar_lea.sflag [#allocation3], 1
    %765 = vsyncpa %s764, 1

</llo_original>
